<compile_context>
chip_gen: v7x
topology: tpu7x:2x2x1
jax: 0.10.0
libtpu: 0.0.40
codegen_flags: <defaults>
</compile_context>

<pallas_src>
import functools

import jax
import jax.numpy as jnp
from jax import lax
from jax.experimental import pallas as pl
from jax.experimental.pallas import tpu as pltpu

_VMEM_LIMIT = 48 * 1024 * 1024  # fits v7x's 64 MiB physical VMEM with headroom


def _choose_q_tile(t):
    for cand in (256, 512, 128):
        if t % cand == 0:
            return cand
    return t  # small / odd T: single query tile
    # TODO(synk): for odd T at large resolutions, pad T to a multiple of 128 and
    # mask the padded key columns for fully lane-dense stores.


# ---------------------------------------------------------------------------
# Kernel 1: GroupNorm statistics pre-pass (per batch, full T).
# Produces per-channel scale/shift with gamma/beta folded in:  h = x*scale+shift
# ---------------------------------------------------------------------------
def _groupnorm_stats_kernel(x_ref, gamma_ref, beta_ref, member_ref, member_t_ref,
                            scale_ref, shift_ref, *, eps):
    x = x_ref[0]                                   # (C, T) f32
    C, T = x.shape
    num_groups = member_ref.shape[0]
    n = float((C // num_groups) * T)
    member = member_ref[...]                       # (G, C)
    member_t = member_t_ref[...]                   # (C, G)

    # reduce along lanes first, then tiny group matmuls (no full-(C,T) matmul)
    ch_sum = jnp.sum(x, axis=1, keepdims=True)                                   # (C, 1)
    g_mean = jnp.dot(member, ch_sum, preferred_element_type=jnp.float32) / n     # (G, 1)
    ch_mean = jnp.dot(member_t, g_mean, preferred_element_type=jnp.float32)      # (C, 1)

    # second (centered) pass -> numerically stable variance
    xc = x - ch_mean
    ch_sq = jnp.sum(xc * xc, axis=1, keepdims=True)                              # (C, 1)
    g_var = jnp.dot(member, ch_sq, preferred_element_type=jnp.float32) / n       # (G, 1)
    g_rstd = lax.rsqrt(g_var + eps)
    ch_rstd = jnp.dot(member_t, g_rstd, preferred_element_type=jnp.float32)      # (C, 1)

    scale = ch_rstd * gamma_ref[...]
    scale_ref[0] = scale
    shift_ref[0] = beta_ref[...] - ch_mean * scale


# ---------------------------------------------------------------------------
# Kernel 2: projections + multi-head attention + back projection + residual.
# grid = (B, num_q_tiles); K/V cached in scratch at the first Q tile per batch.
# ---------------------------------------------------------------------------
def _attention_kernel(x_full_ref, x_tile_ref, scale_ref, shift_ref, cond_ref,
                      w_q_ref, b_q_ref, w_k_ref, b_k_ref, w_v_ref, b_v_ref,
                      w_kc_ref, b_kc_ref, w_vc_ref, b_vc_ref,
                      w_back_ref, b_back_ref,
                      o_ref,
                      q_sc, k_sc, v_sc, kc_sc, vc_sc, attn_sc,
                      *, num_heads, head_size, tq):
    nh, hs = num_heads, head_size
    scale = scale_ref[0]                           # (C, 1) f32
    shift = shift_ref[0]                           # (C, 1) f32

    # ---- once per batch (first Q tile): feature K/V and condition K/V ----
    @pl.when(pl.program_id(1) == 0)
    def _compute_kv():
        h_full = (x_full_ref[0] * scale + shift).astype(jnp.bfloat16)   # (C, T)
        kf = jnp.dot(w_k_ref[...], h_full,
                     preferred_element_type=jnp.float32) + b_k_ref[...]
        vf = jnp.dot(w_v_ref[...], h_full,
                     preferred_element_type=jnp.float32) + b_v_ref[...]
        k_sc[...] = kf.astype(jnp.bfloat16).reshape(nh, hs, kf.shape[-1])
        v_sc[...] = vf.astype(jnp.bfloat16).reshape(nh, hs, vf.shape[-1])

        c = cond_ref[0].astype(jnp.bfloat16)                            # (Cs, S)
        kc = jnp.dot(w_kc_ref[...], c,
                     preferred_element_type=jnp.float32) + b_kc_ref[...]
        vc = jnp.dot(w_vc_ref[...], c,
                     preferred_element_type=jnp.float32) + b_vc_ref[...]
        kc_sc[...] = kc.astype(jnp.bfloat16).reshape(nh, hs, kc.shape[-1])
        vc_sc[...] = vc.astype(jnp.bfloat16).reshape(nh, hs, vc.shape[-1])

    # ---- per Q tile: normalize, project Q (scale folded into w_q/b_q) ----
    x_tile = x_tile_ref[0]                                              # (C, tq) f32
    h_tile = (x_tile * scale + shift).astype(jnp.bfloat16)
    q = jnp.dot(w_q_ref[...], h_tile,
                preferred_element_type=jnp.float32) + b_q_ref[...]      # (C, tq)
    q_sc[...] = q.astype(jnp.bfloat16).reshape(nh, hs, tq)

    # ---- per-head attention (feature keys + condition keys, one softmax) ----
    def head_body(hh, carry):
        qh = q_sc[hh]                                                   # (hs, tq) bf16
        kh = k_sc[hh]                                                   # (hs, T)  bf16
        vh = v_sc[hh]                                                   # (hs, T)  bf16
        kch = kc_sc[hh]                                                 # (hs, S)  bf16
        vch = vc_sc[hh]                                                 # (hs, S)  bf16

        # logits: contract the head axis directly (no transposes)
        lf = lax.dot_general(qh, kh, (((0,), (0,)), ((), ())),
                             preferred_element_type=jnp.float32)        # (tq, T)
        lc = lax.dot_general(qh, kch, (((0,), (0,)), ((), ())),
                             preferred_element_type=jnp.float32)        # (tq, S)

        m = jnp.maximum(jnp.max(lf, axis=-1, keepdims=True),
                        jnp.max(lc, axis=-1, keepdims=True))            # (tq, 1)
        pf = jnp.exp(lf - m)
        pc = jnp.exp(lc - m)
        denom = (jnp.sum(pf, axis=-1, keepdims=True)
                 + jnp.sum(pc, axis=-1, keepdims=True))
        inv = pl.reciprocal(denom, approx=True)
        pf = (pf * inv).astype(jnp.bfloat16)
        pc = (pc * inv).astype(jnp.bfloat16)

        # PV: contract the key axis of both operands (no attn.T)
        of = lax.dot_general(vh, pf, (((1,), (1,)), ((), ())),
                             preferred_element_type=jnp.float32)        # (hs, tq)
        oc = lax.dot_general(vch, pc, (((1,), (1,)), ((), ())),
                             preferred_element_type=jnp.float32)        # (hs, tq)
        attn_sc[hh] = (of + oc).astype(jnp.bfloat16)
        return carry

    lax.fori_loop(0, nh, head_body, 0)

    # ---- back projection (zero-initialized in the module) + residual ----
    attn_all = attn_sc[...].reshape(nh * hs, tq)                        # (C, tq) bf16
    y = jnp.dot(w_back_ref[...], attn_all,
                preferred_element_type=jnp.float32) + b_back_ref[...]
    o_ref[0] = x_tile + y


# ---------------------------------------------------------------------------
# Wrapper
# ---------------------------------------------------------------------------
def attention_block_forward(x, cond, params, *, num_groups, head_size):
    B, C, H, W = x.shape
    T = H * W
    Cs, S = cond.shape[1], cond.shape[2]
    nh = C // head_size
    hs = head_size
    tq = _choose_q_tile(T)
    nq = T // tq
    gs = C // num_groups

    x2 = x.reshape(B, C, T).astype(jnp.float32)
    cond = cond.astype(jnp.float32)

    gamma = params["gamma"].reshape(C, 1).astype(jnp.float32)
    beta = params["beta"].reshape(C, 1).astype(jnp.float32)

    # group-membership matrices (precomputed once, not rebuilt per grid step)
    member = (jnp.arange(C)[None, :] // gs ==
              jnp.arange(num_groups)[:, None]).astype(jnp.float32)      # (G, C)
    member_t = member.T                                                 # (C, G)

    # ---- GroupNorm statistics pre-pass ----
    scale, shift = pl.pallas_call(
        functools.partial(_groupnorm_stats_kernel, eps=1e-5),
        out_shape=(jax.ShapeDtypeStruct((B, C, 1), jnp.float32),
                   jax.ShapeDtypeStruct((B, C, 1), jnp.float32)),
        grid_spec=pltpu.PrefetchScalarGridSpec(
            num_scalar_prefetch=0,
            grid=(B,),
            in_specs=[
                pl.BlockSpec((1, C, T), lambda b: (b, 0, 0)),
                pl.BlockSpec((C, 1), lambda b: (0, 0)),
                pl.BlockSpec((C, 1), lambda b: (0, 0)),
                pl.BlockSpec((num_groups, C), lambda b: (0, 0)),
                pl.BlockSpec((C, num_groups), lambda b: (0, 0)),
            ],
            out_specs=[pl.BlockSpec((1, C, 1), lambda b: (b, 0, 0)),
                       pl.BlockSpec((1, C, 1), lambda b: (b, 0, 0))],
        ),
        compiler_params=pltpu.CompilerParams(
            dimension_semantics=("parallel",),
            vmem_limit_bytes=_VMEM_LIMIT),
    )(x2, gamma, beta, member, member_t)

    # ---- split / fold / cast weights (trace-time, zero runtime cost) ----
    # Per-head row layout of qkv conv: [q(hs), k(hs), v(hs)]; of cond conv: [k, v].
    qscale = float(hs) ** -0.5   # q*hs^-.25 times k*hs^-.25 == q*hs^-.5 folded into Q
    w_qkv = params["w_qkv"].reshape(nh, 3, hs, C)
    b_qkv = params["b_qkv"].reshape(nh, 3, hs, 1)
    w_q = (w_qkv[:, 0].reshape(C, C) * qscale).astype(jnp.bfloat16)
    w_k = w_qkv[:, 1].reshape(C, C).astype(jnp.bfloat16)
    w_v = w_qkv[:, 2].reshape(C, C).astype(jnp.bfloat16)
    b_q = (b_qkv[:, 0].reshape(C, 1) * qscale).astype(jnp.float32)
    b_k = b_qkv[:, 1].reshape(C, 1).astype(jnp.float32)
    b_v = b_qkv[:, 2].reshape(C, 1).astype(jnp.float32)

    w_cnd = params["w_cond"].reshape(nh, 2, hs, Cs)
    b_cnd = params["b_cond"].reshape(nh, 2, hs, 1)
    w_kc = w_cnd[:, 0].reshape(C, Cs).astype(jnp.bfloat16)
    w_vc = w_cnd[:, 1].reshape(C, Cs).astype(jnp.bfloat16)
    b_kc = b_cnd[:, 0].reshape(C, 1).astype(jnp.float32)
    b_vc = b_cnd[:, 1].reshape(C, 1).astype(jnp.float32)

    w_back = params["w_back"].astype(jnp.bfloat16)
    b_back = params["b_back"].reshape(C, 1).astype(jnp.float32)

    kernel = functools.partial(_attention_kernel,
                               num_heads=nh, head_size=hs, tq=tq)

    out = pl.pallas_call(
        kernel,
        out_shape=jax.ShapeDtypeStruct((B, C, T), jnp.float32),
        grid_spec=pltpu.PrefetchScalarGridSpec(
            num_scalar_prefetch=0,
            grid=(B, nq),
            in_specs=[
                pl.BlockSpec((1, C, T), lambda b, q: (b, 0, 0)),    # x full (resident per b)
                pl.BlockSpec((1, C, tq), lambda b, q: (b, 0, q)),   # x query tile
                pl.BlockSpec((1, C, 1), lambda b, q: (b, 0, 0)),    # scale
                pl.BlockSpec((1, C, 1), lambda b, q: (b, 0, 0)),    # shift
                pl.BlockSpec((1, Cs, S), lambda b, q: (b, 0, 0)),   # condition
                pl.BlockSpec((C, C), lambda b, q: (0, 0)),          # w_q (bf16, scale folded)
                pl.BlockSpec((C, 1), lambda b, q: (0, 0)),          # b_q
                pl.BlockSpec((C, C), lambda b, q: (0, 0)),          # w_k
                pl.BlockSpec((C, 1), lambda b, q: (0, 0)),          # b_k
                pl.BlockSpec((C, C), lambda b, q: (0, 0)),          # w_v
                pl.BlockSpec((C, 1), lambda b, q: (0, 0)),          # b_v
                pl.BlockSpec((C, Cs), lambda b, q: (0, 0)),         # w_kc
                pl.BlockSpec((C, 1), lambda b, q: (0, 0)),          # b_kc
                pl.BlockSpec((C, Cs), lambda b, q: (0, 0)),         # w_vc
                pl.BlockSpec((C, 1), lambda b, q: (0, 0)),          # b_vc
                pl.BlockSpec((C, C), lambda b, q: (0, 0)),          # w_back
                pl.BlockSpec((C, 1), lambda b, q: (0, 0)),          # b_back
            ],
            out_specs=pl.BlockSpec((1, C, tq), lambda b, q: (b, 0, q)),
            scratch_shapes=[
                pltpu.VMEM((nh, hs, tq), jnp.bfloat16),   # Q (per head)
                pltpu.VMEM((nh, hs, T), jnp.bfloat16),    # K feature (cached per batch)
                pltpu.VMEM((nh, hs, T), jnp.bfloat16),    # V feature
                pltpu.VMEM((nh, hs, S), jnp.bfloat16),    # K condition
                pltpu.VMEM((nh, hs, S), jnp.bfloat16),    # V condition
                pltpu.VMEM((nh, hs, tq), jnp.bfloat16),   # per-head attention output
            ]),
        compiler_params=pltpu.CompilerParams(
            # Q-tile axis must be "arbitrary": K/V scratch is filled at q==0 of
            # each batch and reused for the remaining tiles of that batch.
            dimension_semantics=("parallel", "arbitrary"),
            vmem_limit_bytes=_VMEM_LIMIT),
    )(x2, x2, scale, shift, cond,
      w_q, b_q, w_k, b_k, w_v, b_v, w_kc, b_kc, w_vc, b_vc, w_back, b_back)

    return out.reshape(B, C, H, W)


# ---------------------------------------------------------------------------
# Pure-JAX reference mirroring the PyTorch forward (checkpoint is a forward no-op)
# ---------------------------------------------------------------------------
def reference_forward(x, cond, params, *, num_groups, head_size):
    B, C, H, W = x.shape
    T = H * W
    nh = C // head_size
    x2 = x.reshape(B, C, T)
    xr = x2.reshape(B, num_groups, -1)
    mean = xr.mean(-1, keepdims=True)
    var = ((xr - mean) ** 2).mean(-1, keepdims=True)
    h = ((xr - mean) / jnp.sqrt(var + 1e-5)).reshape(B, C, T)
    h = h * params["gamma"][None, :, None] + params["beta"][None, :, None]
    qkv = jnp.einsum('oc,bct->bot', params["w_qkv"], h) + params["b_qkv"][None, :, None]
    kvc = jnp.einsum('oc,bct->bot', params["w_cond"], cond) + params["b_cond"][None, :, None]
    qkv = qkv.reshape(B * nh, 3 * head_size, T)
    q, k, v = qkv[:, :head_size], qkv[:, head_size:2 * head_size], qkv[:, 2 * head_size:]
    kvc = kvc.reshape(B * nh, 2 * head_size, -1)
    kc, vc = kvc[:, :head_size], kvc[:, head_size:]
    k = jnp.concatenate([k, kc], -1)
    v = jnp.concatenate([v, vc], -1)
    scale = head_size ** -0.25
    logits = jnp.einsum('bct,bcs->bts', q * scale, k * scale)
    attn = jax.nn.softmax(logits, -1)
    out = jnp.einsum('bts,bcs->bct', attn, v).reshape(B, C, T)
    y = jnp.einsum('oc,bct->bot', params["w_back"], out) + params["b_back"][None, :, None]
    return y.reshape(B, C, H, W) + x


def init_params(key, channel_count, head_size, space_size):
    C = channel_count
    ks = jax.random.split(key, 6)
    return {
        "gamma": 1.0 + 0.1 * jax.random.normal(ks[0], (C,), jnp.float32),
        "beta": 0.1 * jax.random.normal(ks[1], (C,), jnp.float32),
        "w_qkv": 0.1 * jax.random.normal(ks[2], (3 * C, C), jnp.float32),
        "b_qkv": 0.1 * jax.random.normal(ks[3], (3 * C,), jnp.float32),
        "w_cond": 0.1 * jax.random.normal(ks[4], (2 * C, space_size), jnp.float32),
        "b_cond": 0.1 * jax.random.normal(ks[5], (2 * C,), jnp.float32),
        # back_layer is zero_module()'d in the PyTorch __init__.
        "w_back": jnp.zeros((C, C), jnp.float32),
        "b_back": jnp.zeros((C,), jnp.float32),
    }


if __name__ == "__main__":
    # GroupNorm(32, C) requires C % 32 == 0; C must also be divisible by head_size.
    B, C, H, W = 2, 64, 8, 8        # input_feature [B, C, H, W]
    head_size = 32                  # -> 2 heads
    space_size = 16                 # condition channels
    S = 8                           # condition length
    num_groups = 32

    key = jax.random.PRNGKey(0)
    kx, kc, kp, kb = jax.random.split(key, 4)
    x = jax.random.normal(kx, (B, C, H, W), jnp.float32)
    cond = jax.random.normal(kc, (B, space_size, S), jnp.float32)
    params = init_params(kp, C, head_size, space_size)

    out = attention_block_forward(x, cond, params,
                                  num_groups=num_groups, head_size=head_size)
    out = jax.block_until_ready(out)

    ref = reference_forward(x, cond, params,
                            num_groups=num_groups, head_size=head_size)
    # zero-init back projection -> output equals residual (exact)
    assert jnp.allclose(out, ref, atol=3e-2, rtol=3e-2), \
        float(jnp.max(jnp.abs(out - ref)))

    # Non-zero back projection so the attention path actually influences the
    # output (bf16-matmul tolerance vs. the f32 reference).
    params_nz = dict(params)
    params_nz["w_back"] = 0.1 * jax.random.normal(kb, (C, C), jnp.float32)
    params_nz["b_back"] = 0.05 * jnp.ones((C,), jnp.float32)
    out_nz = jax.block_until_ready(
        attention_block_forward(x, cond, params_nz,
                                num_groups=num_groups, head_size=head_size))
    ref_nz = reference_forward(x, cond, params_nz,
                               num_groups=num_groups, head_size=head_size)
    assert jnp.allclose(out_nz, ref_nz, atol=3e-2, rtol=3e-2), \
        float(jnp.max(jnp.abs(out_nz - ref_nz)))

    print("KERNEL_OK")
</pallas_src>

<mosaic_0001>
module attributes {stable_mosaic.version = 11 : i64} {
  func.func @_groupnorm_stats_kernel(%arg0: i32, %arg1: memref<1x64x64xf32, #tpu.memory_space<vmem>>, %arg2: memref<64x1xf32, #tpu.memory_space<vmem>>, %arg3: memref<64x1xf32, #tpu.memory_space<vmem>>, %arg4: memref<32x64xf32, #tpu.memory_space<vmem>>, %arg5: memref<64x32xf32, #tpu.memory_space<vmem>>, %arg6: memref<1x64x1xf32, #tpu.memory_space<vmem>>, %arg7: memref<1x64x1xf32, #tpu.memory_space<vmem>>) attributes {dimension_semantics = [#tpu.dimension_semantics<parallel>], iteration_bounds = array<i64: 2>, scalar_prefetch = 0 : i64, scratch_operands = 0 : i64, tpu.core_type = #tpu.core_type<tc>, window_params = [{transform_indices = @transform_0, window_bounds = array<i64: 1, 64, 64>}, {pipeline_mode = #tpu.pipeline_mode<synchronous>, transform_indices = @transform_1, window_bounds = array<i64: 64, 1>}, {pipeline_mode = #tpu.pipeline_mode<synchronous>, transform_indices = @transform_2, window_bounds = array<i64: 64, 1>}, {pipeline_mode = #tpu.pipeline_mode<synchronous>, transform_indices = @transform_3, window_bounds = array<i64: 32, 64>}, {pipeline_mode = #tpu.pipeline_mode<synchronous>, transform_indices = @transform_4, window_bounds = array<i64: 64, 32>}, {transform_indices = @transform_5, window_bounds = array<i64: 1, 64, 1>}, {transform_indices = @transform_6, window_bounds = array<i64: 1, 64, 1>}]} {
    %c0 = arith.constant 0 : index
    %c0_0 = arith.constant 0 : index
    %c0_1 = arith.constant 0 : index
    %0 = vector.load %arg1[%c0, %c0_0, %c0_1] : memref<1x64x64xf32, #tpu.memory_space<vmem>>, vector<1x64x64xf32>
    %1 = vector.shape_cast %0 : vector<1x64x64xf32> to vector<64x64xf32>
    %c0_2 = arith.constant 0 : index
    %c0_3 = arith.constant 0 : index
    %2 = vector.load %arg4[%c0_2, %c0_3] : memref<32x64xf32, #tpu.memory_space<vmem>>, vector<32x64xf32>
    %c0_4 = arith.constant 0 : index
    %c0_5 = arith.constant 0 : index
    %3 = vector.load %arg5[%c0_4, %c0_5] : memref<64x32xf32, #tpu.memory_space<vmem>>, vector<64x32xf32>
    %cst = arith.constant dense<0.000000e+00> : vector<64xf32>
    %4 = vector.multi_reduction <add>, %1, %cst [1] : vector<64x64xf32> to vector<64xf32>
    %5 = vector.shape_cast %4 : vector<64xf32> to vector<64x1xf32>
    %cst_6 = arith.constant dense<0.000000e+00> : vector<32x1xf32>
    %6 = tpu.matmul %2, %5, %cst_6 {dimension_numbers = #tpu.dot_dimension_numbers<[1], [0], [0], [1], [0, 0, 1, 1], [], []>} : vector<32x64xf32>, vector<64x1xf32>, vector<32x1xf32> -> vector<32x1xf32>
    %cst_7 = arith.constant 1.280000e+02 : f32
    %7 = vector.broadcast %cst_7 : f32 to vector<32x1xf32>
    %8 = arith.divf %6, %7 : vector<32x1xf32>
    %cst_8 = arith.constant dense<0.000000e+00> : vector<64x1xf32>
    %9 = tpu.matmul %3, %8, %cst_8 {dimension_numbers = #tpu.dot_dimension_numbers<[1], [0], [0], [1], [0, 0, 1, 1], [], []>} : vector<64x32xf32>, vector<32x1xf32>, vector<64x1xf32> -> vector<64x1xf32>
    %10 = vector.broadcast %9 : vector<64x1xf32> to vector<64x64xf32>
    %11 = arith.subf %1, %10 : vector<64x64xf32>
    %12 = arith.mulf %11, %11 : vector<64x64xf32>
    %cst_9 = arith.constant dense<0.000000e+00> : vector<64xf32>
    %13 = vector.multi_reduction <add>, %12, %cst_9 [1] : vector<64x64xf32> to vector<64xf32>
    %14 = vector.shape_cast %13 : vector<64xf32> to vector<64x1xf32>
    %cst_10 = arith.constant dense<0.000000e+00> : vector<32x1xf32>
    %15 = tpu.matmul %2, %14, %cst_10 {dimension_numbers = #tpu.dot_dimension_numbers<[1], [0], [0], [1], [0, 0, 1, 1], [], []>} : vector<32x64xf32>, vector<64x1xf32>, vector<32x1xf32> -> vector<32x1xf32>
    %cst_11 = arith.constant 1.280000e+02 : f32
    %16 = vector.broadcast %cst_11 : f32 to vector<32x1xf32>
    %17 = arith.divf %15, %16 : vector<32x1xf32>
    %cst_12 = arith.constant 9.99999974E-6 : f32
    %18 = vector.broadcast %cst_12 : f32 to vector<32x1xf32>
    %19 = arith.addf %17, %18 : vector<32x1xf32>
    %20 = math.rsqrt %19 : vector<32x1xf32>
    %cst_13 = arith.constant dense<0.000000e+00> : vector<64x1xf32>
    %21 = tpu.matmul %3, %20, %cst_13 {dimension_numbers = #tpu.dot_dimension_numbers<[1], [0], [0], [1], [0, 0, 1, 1], [], []>} : vector<64x32xf32>, vector<32x1xf32>, vector<64x1xf32> -> vector<64x1xf32>
    %c0_14 = arith.constant 0 : index
    %c0_15 = arith.constant 0 : index
    %22 = vector.load %arg2[%c0_14, %c0_15] : memref<64x1xf32, #tpu.memory_space<vmem>>, vector<64x1xf32>
    %23 = arith.mulf %21, %22 : vector<64x1xf32>
    %c0_16 = arith.constant 0 : index
    %c0_17 = arith.constant 0 : index
    %c0_18 = arith.constant 0 : index
    %24 = vector.load %arg6[%c0_16, %c0_17, %c0_18] : memref<1x64x1xf32, #tpu.memory_space<vmem>>, vector<1x64x1xf32>
    %25 = vector.shape_cast %24 : vector<1x64x1xf32> to vector<64x1xf32>
    %26 = vector.shape_cast %23 : vector<64x1xf32> to vector<1x64x1xf32>
    tpu.vector_store %arg6[%c0_16, %c0_17, %c0_18], %26 {strides = array<i32>} : memref<1x64x1xf32, #tpu.memory_space<vmem>>, vector<1x64x1xf32>,
    %c0_19 = arith.constant 0 : index
    %c0_20 = arith.constant 0 : index
    %27 = vector.load %arg3[%c0_19, %c0_20] : memref<64x1xf32, #tpu.memory_space<vmem>>, vector<64x1xf32>
    %28 = arith.mulf %9, %23 : vector<64x1xf32>
    %29 = arith.subf %27, %28 : vector<64x1xf32>
    %c0_21 = arith.constant 0 : index
    %c0_22 = arith.constant 0 : index
    %c0_23 = arith.constant 0 : index
    %30 = vector.load %arg7[%c0_21, %c0_22, %c0_23] : memref<1x64x1xf32, #tpu.memory_space<vmem>>, vector<1x64x1xf32>
    %31 = vector.shape_cast %30 : vector<1x64x1xf32> to vector<64x1xf32>
    %32 = vector.shape_cast %29 : vector<64x1xf32> to vector<1x64x1xf32>
    tpu.vector_store %arg7[%c0_21, %c0_22, %c0_23], %32 {strides = array<i32>} : memref<1x64x1xf32, #tpu.memory_space<vmem>>, vector<1x64x1xf32>,
    return
  }
  func.func @transform_0(%arg0: i32) -> (i32, i32, i32) {
    %c0_i32 = arith.constant 0 : i32
    %c0_i32_0 = arith.constant 0 : i32
    %c0_i32_1 = arith.constant 0 : i32
    return %arg0, %c0_i32, %c0_i32_0 : i32, i32, i32
  }
  func.func @transform_1(%arg0: i32) -> (i32, i32) {
    %c0_i32 = arith.constant 0 : i32
    %c0_i32_0 = arith.constant 0 : i32
    %c0_i32_1 = arith.constant 0 : i32
    return %c0_i32, %c0_i32_0 : i32, i32
  }
  func.func @transform_2(%arg0: i32) -> (i32, i32) {
    %c0_i32 = arith.constant 0 : i32
    %c0_i32_0 = arith.constant 0 : i32
    %c0_i32_1 = arith.constant 0 : i32
    return %c0_i32, %c0_i32_0 : i32, i32
  }
  func.func @transform_3(%arg0: i32) -> (i32, i32) {
    %c0_i32 = arith.constant 0 : i32
    %c0_i32_0 = arith.constant 0 : i32
    %c0_i32_1 = arith.constant 0 : i32
    return %c0_i32, %c0_i32_0 : i32, i32
  }
  func.func @transform_4(%arg0: i32) -> (i32, i32) {
    %c0_i32 = arith.constant 0 : i32
    %c0_i32_0 = arith.constant 0 : i32
    %c0_i32_1 = arith.constant 0 : i32
    return %c0_i32, %c0_i32_0 : i32, i32
  }
  func.func @transform_5(%arg0: i32) -> (i32, i32, i32) {
    %c0_i32 = arith.constant 0 : i32
    %c0_i32_0 = arith.constant 0 : i32
    %c0_i32_1 = arith.constant 0 : i32
    return %arg0, %c0_i32, %c0_i32_0 : i32, i32, i32
  }
  func.func @transform_6(%arg0: i32) -> (i32, i32, i32) {
    %c0_i32 = arith.constant 0 : i32
    %c0_i32_0 = arith.constant 0 : i32
    %c0_i32_1 = arith.constant 0 : i32
    return %arg0, %c0_i32, %c0_i32_0 : i32, i32, i32
  }
}

</mosaic_0001>

<llo_original>
// kernel: tpu_custom_call.1
$region0: #{tpu_custom_call.1}
  #allocation0 [shape = 'u32[]', space=smem, size = 0x4, offset = 0x4, fixed_abs, tag = 'smem constant byte address 0x4 - core index']
  #allocation1 [shape = 'u32[144,128]{1,0:T(1,128)}', space=vmem, size = 0x12000, scoped, tag = 'internal scratch']
  %s0 = inlined_call_operand.vmem [shape: f32[2,64,64], index: 0, kind: input, shape index: {}]
  %s1 = inlined_call_operand.vmem [shape: f32[64,1], index: 1, kind: input, shape index: {}]
  %s2 = inlined_call_operand.vmem [shape: f32[64,1], index: 2, kind: input, shape index: {}]
  %s3 = inlined_call_operand.vmem [shape: f32[32,64], index: 3, kind: input, shape index: {}]
  %s4 = inlined_call_operand.vmem [shape: f32[64,32], index: 4, kind: input, shape index: {}]
  %s5 = inlined_call_operand.vmem [shape: f32[2,64,1], index: 5, kind: output, shape index: {0}]
  %s6 = inlined_call_operand.vmem [shape: f32[2,64,1], index: 6, kind: output, shape index: {1}]
  %7 = xla_tuple %s5, %s6
  %s8 = sld [smem:[#allocation0]]
  $region61: #{tpu_custom_call.1} parent=0
    _
  %s10 = ssub.s32 1, %s8
  %s11 = scalar_select 0, %s10, %s8
  loop: start=0, step=1, limit=4
  $region2: #{tpu_custom_call.1} parent=0 // loop_pre_header
    _
  $region3: #{tpu_custom_call.1} parent=0 // loop_header
    %s13 = sphi 0, %s17
    %p14 = scmp.ge.s32.totalorder %s13, 4
    %s23 = sphi 0, %s25
    %s26 = sphi 0, %s23
    %s27 = sphi 0, %s26
    %s43 = sphi 0, %s27
    %s47 = sphi 0, %s47
    %s49 = sphi 0, %s47
    %s50 = sphi 0, %s49
    %s64 = sphi 0, %s50
    %s68 = sphi 0, %s68
    %s70 = sphi 0, %s68
    %s71 = sphi 0, %s70
    %s85 = sphi 0, %s71
    %s89 = sphi 0, %s89
    %s91 = sphi 0, %s89
    %s92 = sphi 0, %s91
    %s106 = sphi 0, %s92
    %s110 = sphi 0, %s110
    %s112 = sphi 0, %s110
    %s113 = sphi 0, %s112
    %s127 = sphi 0, %s113
    %s133 = sphi 0, %s135
    %s136 = sphi 0, %s133
    %s137 = sphi 0, %s136
    %s153 = sphi 0, %s137
    %s159 = sphi 0, %s161
    %s162 = sphi 0, %s159
    %s163 = sphi 0, %s162
    %s179 = sphi 0, %s163
  $region4: #{tpu_custom_call.1} parent=0 // loop_header_branch
    %16 = sbr.rel (%p14) target = $region8
  $region5: #{tpu_custom_call.1} parent=0 // loop_body
    %s18 = ssub.s32 %s13, 1
    %s19 = ssub.s32 %s13, 2
    %s20 = sadd.s32 %s13, 1
    %s21 = ssub.s32 %s13, %s20
    %p22 = scmp.eq.s32.totalorder %s21, 0
    %s24 = sadd.s32 %s23, 1
    %s25 = scalar_select %p22, %s23, %s24
    %p28 = pneg %p22
    %p29 = scmp.eq.s32.totalorder %s13, 1
    %p30 = por %p28, %p29
    %p31 = scmp.ne.s32.totalorder %s23, %s26
    %p32 = scmp.eq.s32.totalorder %s13, 0
    %p33 = por %p31, %p32
    %p34 = scmp.ne.s32.totalorder %s23, %s26
    %p35 = scmp.eq.s32.totalorder %s18, 1
    %p36 = por %p34, %p35
    %p37 = scmp.ne.s32.totalorder %s26, %s27
    %p38 = scmp.eq.s32.totalorder %s18, 0
    %p39 = por %p37, %p38
    %p40 = scmp.ne.s32.totalorder %s26, %s27
    %p41 = scmp.eq.s32.totalorder %s19, 1
    %p42 = por %p40, %p41
    %p44 = scmp.ne.s32.totalorder %s27, %s43
    %p45 = scmp.eq.s32.totalorder %s19, 0
    %p46 = por %p44, %p45
    %s48 = sadd.s32 %s47, 1
    %p51 = scmp.eq.s32.totalorder %s13, 1
    %p52 = scmp.ne.s32.totalorder %s47, %s49
    %p53 = scmp.eq.s32.totalorder %s13, 0
    %p54 = por %p52, %p53
    %p55 = scmp.ne.s32.totalorder %s47, %s49
    %p56 = scmp.eq.s32.totalorder %s18, 1
    %p57 = por %p55, %p56
    %p58 = scmp.ne.s32.totalorder %s49, %s50
    %p59 = scmp.eq.s32.totalorder %s18, 0
    %p60 = por %p58, %p59
    %p61 = scmp.ne.s32.totalorder %s49, %s50
    %p62 = scmp.eq.s32.totalorder %s19, 1
    %p63 = por %p61, %p62
    %p65 = scmp.ne.s32.totalorder %s50, %s64
    %p66 = scmp.eq.s32.totalorder %s19, 0
    %p67 = por %p65, %p66
    %s69 = sadd.s32 %s68, 1
    %p72 = scmp.eq.s32.totalorder %s13, 1
    %p73 = scmp.ne.s32.totalorder %s68, %s70
    %p74 = scmp.eq.s32.totalorder %s13, 0
    %p75 = por %p73, %p74
    %p76 = scmp.ne.s32.totalorder %s68, %s70
    %p77 = scmp.eq.s32.totalorder %s18, 1
    %p78 = por %p76, %p77
    %p79 = scmp.ne.s32.totalorder %s70, %s71
    %p80 = scmp.eq.s32.totalorder %s18, 0
    %p81 = por %p79, %p80
    %p82 = scmp.ne.s32.totalorder %s70, %s71
    %p83 = scmp.eq.s32.totalorder %s19, 1
    %p84 = por %p82, %p83
    %p86 = scmp.ne.s32.totalorder %s71, %s85
    %p87 = scmp.eq.s32.totalorder %s19, 0
    %p88 = por %p86, %p87
    %s90 = sadd.s32 %s89, 1
    %p93 = scmp.eq.s32.totalorder %s13, 1
    %p94 = scmp.ne.s32.totalorder %s89, %s91
    %p95 = scmp.eq.s32.totalorder %s13, 0
    %p96 = por %p94, %p95
    %p97 = scmp.ne.s32.totalorder %s89, %s91
    %p98 = scmp.eq.s32.totalorder %s18, 1
    %p99 = por %p97, %p98
    %p100 = scmp.ne.s32.totalorder %s91, %s92
    %p101 = scmp.eq.s32.totalorder %s18, 0
    %p102 = por %p100, %p101
    %p103 = scmp.ne.s32.totalorder %s91, %s92
    %p104 = scmp.eq.s32.totalorder %s19, 1
    %p105 = por %p103, %p104
    %p107 = scmp.ne.s32.totalorder %s92, %s106
    %p108 = scmp.eq.s32.totalorder %s19, 0
    %p109 = por %p107, %p108
    %s111 = sadd.s32 %s110, 1
    %p114 = scmp.eq.s32.totalorder %s13, 1
    %p115 = scmp.ne.s32.totalorder %s110, %s112
    %p116 = scmp.eq.s32.totalorder %s13, 0
    %p117 = por %p115, %p116
    %p118 = scmp.ne.s32.totalorder %s110, %s112
    %p119 = scmp.eq.s32.totalorder %s18, 1
    %p120 = por %p118, %p119
    %p121 = scmp.ne.s32.totalorder %s112, %s113
    %p122 = scmp.eq.s32.totalorder %s18, 0
    %p123 = por %p121, %p122
    %p124 = scmp.ne.s32.totalorder %s112, %s113
    %p125 = scmp.eq.s32.totalorder %s19, 1
    %p126 = por %p124, %p125
    %p128 = scmp.ne.s32.totalorder %s113, %s127
    %p129 = scmp.eq.s32.totalorder %s19, 0
    %p130 = por %p128, %p129
    %s131 = ssub.s32 %s13, %s20
    %p132 = scmp.eq.s32.totalorder %s131, 0
    %s134 = sadd.s32 %s133, 1
    %s135 = scalar_select %p132, %s133, %s134
    %p138 = pneg %p132
    %p139 = scmp.eq.s32.totalorder %s13, 1
    %p140 = por %p138, %p139
    %p141 = scmp.ne.s32.totalorder %s133, %s136
    %p142 = scmp.eq.s32.totalorder %s13, 0
    %p143 = por %p141, %p142
    %p144 = scmp.ne.s32.totalorder %s133, %s136
    %p145 = scmp.eq.s32.totalorder %s18, 1
    %p146 = por %p144, %p145
    %p147 = scmp.ne.s32.totalorder %s136, %s137
    %p148 = scmp.eq.s32.totalorder %s18, 0
    %p149 = por %p147, %p148
    %p150 = scmp.ne.s32.totalorder %s136, %s137
    %p151 = scmp.eq.s32.totalorder %s19, 1
    %p152 = por %p150, %p151
    %p154 = scmp.ne.s32.totalorder %s137, %s153
    %p155 = scmp.eq.s32.totalorder %s19, 0
    %p156 = por %p154, %p155
    %s157 = ssub.s32 %s13, %s20
    %p158 = scmp.eq.s32.totalorder %s157, 0
    %s160 = sadd.s32 %s159, 1
    %s161 = scalar_select %p158, %s159, %s160
    %p164 = pneg %p158
    %p165 = scmp.eq.s32.totalorder %s13, 1
    %p166 = por %p164, %p165
    %p167 = scmp.ne.s32.totalorder %s159, %s162
    %p168 = scmp.eq.s32.totalorder %s13, 0
    %p169 = por %p167, %p168
    %p170 = scmp.ne.s32.totalorder %s159, %s162
    %p171 = scmp.eq.s32.totalorder %s18, 1
    %p172 = por %p170, %p171
    %p173 = scmp.ne.s32.totalorder %s162, %s163
    %p174 = scmp.eq.s32.totalorder %s18, 0
    %p175 = por %p173, %p174
    %p176 = scmp.ne.s32.totalorder %s162, %s163
    %p177 = scmp.eq.s32.totalorder %s19, 1
    %p178 = por %p176, %p177
    %p180 = scmp.ne.s32.totalorder %s163, %s179
    %p181 = scmp.eq.s32.totalorder %s19, 0
    %p182 = por %p180, %p181
    %p183 = scmp.le.s32.totalorder 1, %s13
    %p184 = scmp.lt.s32.totalorder %s13, 3
    %p185 = pnand %p183, %p184
    %p186 = pneg %p185
    // Predicated region
    $region9: #{tpu_custom_call.1} parent=5 // pred_check
      _
    $region10: #{tpu_custom_call.1} parent=5 // pred_check_branch
      %188 = sbr.rel (%p185) target = $region12
    $region11: #{tpu_custom_call.1} parent=5 // pred_region
      %s189 = ssub.s32 %s13, 1
      // Predicated region
      $region13: #{tpu_custom_call.1} parent=11 // pred_check
        %p190 = pneg %p60
      $region14: #{tpu_custom_call.1} parent=11 // pred_check_branch
        %192 = sbr.rel (%p190) target = $region16
      $region15: #{tpu_custom_call.1} parent=11 // pred_region
        _
      $region16: #{tpu_custom_call.1} parent=11 // pred_fallthru
        _
      // Predicated region
      $region17: #{tpu_custom_call.1} parent=11 // pred_check
        %p193 = pneg %p81
      $region18: #{tpu_custom_call.1} parent=11 // pred_check_branch
        %195 = sbr.rel (%p193) target = $region20
      $region19: #{tpu_custom_call.1} parent=11 // pred_region
        _
      $region20: #{tpu_custom_call.1} parent=11 // pred_fallthru
        _
      // Predicated region
      $region21: #{tpu_custom_call.1} parent=11 // pred_check
        %p196 = pneg %p102
      $region22: #{tpu_custom_call.1} parent=11 // pred_check_branch
        %198 = sbr.rel (%p196) target = $region24
      $region23: #{tpu_custom_call.1} parent=11 // pred_region
        _
      $region24: #{tpu_custom_call.1} parent=11 // pred_fallthru
        _
      // Predicated region
      $region25: #{tpu_custom_call.1} parent=11 // pred_check
        %p199 = pneg %p123
      $region26: #{tpu_custom_call.1} parent=11 // pred_check_branch
        %201 = sbr.rel (%p199) target = $region28
      $region27: #{tpu_custom_call.1} parent=11 // pred_region
        _
      $region28: #{tpu_custom_call.1} parent=11 // pred_fallthru
        _
    $region12: #{tpu_custom_call.1} parent=5 // pred_fallthru
      _
    %p202 = scmp.lt.s32.totalorder %s13, 2
    // Predicated region
    $region29: #{tpu_custom_call.1} parent=5 // pred_check
      %p203 = pneg %p202
    $region30: #{tpu_custom_call.1} parent=5 // pred_check_branch
      %205 = sbr.rel (%p203) target = $region32
    $region31: #{tpu_custom_call.1} parent=5 // pred_region
      // Predicated region
      $region33: #{tpu_custom_call.1} parent=31 // pred_check
        %p206 = pneg %p33
      $region34: #{tpu_custom_call.1} parent=31 // pred_check_branch
        %208 = sbr.rel (%p206) target = $region36
      $region35: #{tpu_custom_call.1} parent=31 // pred_region
        %p209 = scmp.lt.s32.totalorder %s13, 1
        %s210 = scalar_select %p209, %s13, 1
        %s211 = smul.addr %s210, 8
        %s212 = smul.addr %s211, 8
        %s213 = scalar_lea.vmem %s0, %s212
      $region36: #{tpu_custom_call.1} parent=31 // pred_fallthru
        _
    $region32: #{tpu_custom_call.1} parent=5 // pred_fallthru
      _
    %p214 = scmp.le.s32.totalorder 1, %s13
    %p215 = scmp.lt.s32.totalorder %s13, 3
    %p216 = pnand %p214, %p215
    %p217 = pneg %p216
    // Predicated region
    $region37: #{tpu_custom_call.1} parent=5 // pred_check
      _
    $region38: #{tpu_custom_call.1} parent=5 // pred_check_branch
      %219 = sbr.rel (%p216) target = $region40
    $region39: #{tpu_custom_call.1} parent=5 // pred_region
      %s220 = ssub.s32 %s13, 1
      %p221 = scmp.lt.s32.totalorder %s18, 1
      %s222 = scalar_select %p221, %s18, 1
      %s223 = smul.addr %s222, 8
      %s224 = smul.addr %s223, 8
      %s225 = scalar_lea.vmem %s0, %s224
      %p226 = pneg %p39
      %p227 = pneg %p36
      %p228 = pneg %p60
      %p229 = pneg %p57
      %p230 = pneg %p81
      %p231 = pneg %p78
      %p232 = pneg %p102
      %p233 = pneg %p99
      %p234 = pneg %p123
      %p235 = pneg %p120
      %p236 = pneg %p149
      %p237 = pneg %p146
      %p238 = scmp.lt.s32.totalorder %s18, 1
      %s239 = scalar_select %p238, %s18, 1
      %s240 = smul.addr %s239, 8
      %s241 = smul.addr %s240, 8
      %s242 = scalar_lea.vmem %s5, %s241
      %p243 = pneg %p175
      %p244 = pneg %p172
      %p245 = scmp.lt.s32.totalorder %s18, 1
      %s246 = scalar_select %p245, %s18, 1
      %s247 = smul.addr %s246, 8
      %s248 = smul.addr %s247, 8
      %s249 = scalar_lea.vmem %s6, %s248
      %p250 = scmp.lt.s32.totalorder %s18, 1
      %s251 = scalar_select %p250, %s18, 1
      %s252 = smul.addr %s251, 8
      %s253 = smul.addr %s252, 8
      %s254 = scalar_lea.vmem %s0, %s253
      %p255 = scmp.lt.s32.totalorder %s18, 1
      %s256 = scalar_select %p255, %s18, 1
      %s257 = smul.addr %s256, 8
      %s258 = smul.addr %s257, 8
      %s259 = scalar_lea.vmem %s5, %s258
      %p260 = scmp.lt.s32.totalorder %s18, 1
      %s261 = scalar_select %p260, %s18, 1
      %s262 = smul.addr %s261, 8
      %s263 = smul.addr %s262, 8
      %s264 = scalar_lea.vmem %s6, %s263
      %v265 = vld [vmem:[%s254] sm:$0xff]
      %v266 = vld [vmem:[%s254 + $0x8] sm:$0xff]
      %v267 = vld [vmem:[%s254 + $0x10] sm:$0xff]
      %v268 = vld [vmem:[%s254 + $0x18] sm:$0xff]
      %v269 = vld [vmem:[%s254 + $0x20] sm:$0xff]
      %v270 = vld [vmem:[%s254 + $0x28] sm:$0xff]
      %v271 = vld [vmem:[%s254 + $0x30] sm:$0xff]
      %v272 = vld [vmem:[%s254 + $0x38] sm:$0xff]
      %v273 = vld [vmem:[%s3] sm:$0xff]
      %v274 = vld [vmem:[%s3 + $0x8] sm:$0xff]
      %v275 = vld [vmem:[%s3 + $0x10] sm:$0xff]
      %v276 = vld [vmem:[%s3 + $0x18] sm:$0xff]
      %v277 = vld [vmem:[%s4] sm:$0xff]
      %v278 = vld [vmem:[%s4 + $0x8] sm:$0xff]
      %v279 = vld [vmem:[%s4 + $0x10] sm:$0xff]
      %v280 = vld [vmem:[%s4 + $0x18] sm:$0xff]
      %v281 = vld [vmem:[%s4 + $0x20] sm:$0xff]
      %v282 = vld [vmem:[%s4 + $0x28] sm:$0xff]
      %v283 = vld [vmem:[%s4 + $0x30] sm:$0xff]
      %v284 = vld [vmem:[%s4 + $0x38] sm:$0xff]
      %vm285 = vcmask 523264
      %v286 = vsel %vm285, %v265, 0.0
      %287 = vadd.xlane.f32.xlu0 %v286
      %v288 = vpop.xlane.xlu0 %287
      %v289 = vsel %vm285, %v266, 0.0
      %290 = vadd.xlane.f32.xlu0 %v289
      %v291 = vpop.xlane.xlu0 %290
      %v292 = vsel %vm285, %v267, 0.0
      %293 = vadd.xlane.f32.xlu0 %v292
      %v294 = vpop.xlane.xlu0 %293
      %v295 = vsel %vm285, %v268, 0.0
      %296 = vadd.xlane.f32.xlu0 %v295
      %v297 = vpop.xlane.xlu0 %296
      %v298 = vsel %vm285, %v269, 0.0
      %299 = vadd.xlane.f32.xlu0 %v298
      %v300 = vpop.xlane.xlu0 %299
      %v301 = vsel %vm285, %v270, 0.0
      %302 = vadd.xlane.f32.xlu0 %v301
      %v303 = vpop.xlane.xlu0 %302
      %v304 = vsel %vm285, %v271, 0.0
      %305 = vadd.xlane.f32.xlu0 %v304
      %v306 = vpop.xlane.xlu0 %305
      %v307 = vsel %vm285, %v272, 0.0
      %308 = vadd.xlane.f32.xlu0 %v307
      %v309 = vpop.xlane.xlu0 %308
      %v311 = vsel %vm285, %v273, 0
      %v314 = vsel %vm285, %v274, 0
      %v317 = vsel %vm285, %v275, 0
      %v320 = vsel %vm285, %v276, 0
      %322 = vmatprep.subr.mxu0 0.0
      %323 = vmatpush1.msra.mxu0 %v288
      %324 = vmatprep.subr.mxu0 0.0
      %325 = vmatpush1.msra.mxu0 %v291
      %326 = vmatprep.subr.mxu0 0.0
      %327 = vmatpush1.msra.mxu0 %v294
      %328 = vmatprep.subr.mxu0 0.0
      %329 = vmatpush1.msra.mxu0 %v297
      %330 = vmatprep.subr.mxu0 0.0
      %331 = vmatpush1.msra.mxu0 %v300
      %332 = vmatprep.subr.mxu0 0.0
      %333 = vmatpush1.msra.mxu0 %v303
      %334 = vmatprep.subr.mxu0 0.0
      %335 = vmatpush1.msra.mxu0 %v306
      %336 = vmatprep.subr.mxu0 0.0
      %337 = vmatpush1.msra.mxu0 %v309
      %338 = vmatprep.subr.mxu0 0.0
      %339 = vmatpush1.msra.mxu0 0.0
      %340 = vmatprep.subr.mxu0 0.0
      %341 = vmatpush1.msra.mxu0 0.0
      %342 = vmatprep.subr.mxu0 0.0
      %343 = vmatpush1.msra.mxu0 0.0
      %344 = vmatprep.subr.mxu0 0.0
      %345 = vmatpush1.msra.mxu0 0.0
      %346 = vmatprep.subr.mxu0 0.0
      %347 = vmatpush1.msra.mxu0 0.0
      %348 = vmatprep.subr.mxu0 0.0
      %349 = vmatpush1.msra.mxu0 0.0
      %350 = vmatprep.subr.mxu0 0.0
      %351 = vmatpush1.msra.mxu0 0.0
      %352 = vmatprep.subr.mxu0 0.0
      %353 = vmatpush1.msra.mxu0 0.0
      %354 = vmatprep.subr.mxu0 0.0
      %355 = vmatpush1.msra.mxu0 0.0
      %356 = vmatprep.subr.mxu0 0.0
      %357 = vmatpush1.msra.mxu0 0.0
      %358 = vmatprep.subr.mxu0 0.0
      %359 = vmatpush1.msra.mxu0 0.0
      %360 = vmatprep.subr.mxu0 0.0
      %361 = vmatpush1.msra.mxu0 0.0
      %362 = vmatprep.subr.mxu0 0.0
      %363 = vmatpush1.msra.mxu0 0.0
      %364 = vmatprep.subr.mxu0 0.0
      %365 = vmatpush1.msra.mxu0 0.0
      %366 = vmatprep.subr.mxu0 0.0
      %367 = vmatpush1.msra.mxu0 0.0
      %368 = vmatprep.subr.mxu0 0.0
      %369 = vmatpush1.msra.mxu0 0.0
      %370 = vmatprep.subr.mxu0 0.0
      %371 = vmatpush1.msra.mxu0 0.0
      %372 = vmatprep.subr.mxu0 0.0
      %373 = vmatpush1.msra.mxu0 0.0
      %374 = vmatprep.subr.mxu0 0.0
      %375 = vmatpush1.msra.mxu0 0.0
      %376 = vmatprep.subr.mxu0 0.0
      %377 = vmatpush1.msra.mxu0 0.0
      %378 = vmatprep.subr.mxu0 0.0
      %379 = vmatpush1.msra.mxu0 0.0
      %380 = vmatprep.subr.mxu0 0.0
      %381 = vmatpush1.msra.mxu0 0.0
      %382 = vmatprep.subr.mxu0 0.0
      %383 = vmatpush1.msra.mxu0 0.0
      %384 = vmatprep.subr.mxu0 0.0
      %385 = vmatpush1.msra.mxu0 0.0
      %386 = vmatprep.mubr.f32.mxu0 0.0
      %387 = vmatmul.mubr.f32.gmra.mrb[0].mxu0 %v311
      %v388 = vpop.f32.mrb[0].mxu0
      %v389 = vadd.f32 0.0, %v388
      %v390 = vpop.f32.mrb[0].mxu0
      %391 = vmatprep.mubr.f32.mxu0 0.0
      %392 = vmatmul.mubr.f32.gmra.mrb[0].mxu0 %v314
      %v393 = vpop.f32.mrb[0].mxu0
      %v394 = vadd.f32 0.0, %v393
      %v395 = vpop.f32.mrb[0].mxu0
      %396 = vmatprep.mubr.f32.mxu0 0.0
      %397 = vmatmul.mubr.f32.gmra.mrb[0].mxu0 %v317
      %v398 = vpop.f32.mrb[0].mxu0
      %v399 = vadd.f32 0.0, %v398
      %v400 = vpop.f32.mrb[0].mxu0
      %401 = vmatprep.mubr.f32.mxu0 0.0
      %402 = vmatmul.mubr.f32.gmra.mrb[0].mxu0 %v320
      %v403 = vpop.f32.mrb[0].mxu0
      %v404 = vadd.f32 0.0, %v403
      %v405 = vpop.f32.mrb[0].mxu0
      %406 = vdwg.mxu0
      %v407 = vrcp.pop 128.0
      %v408 = vmul.f32 %v389, %v407
      %v409 = vmul.f32 %v394, %v407
      %v410 = vmul.f32 %v399, %v407
      %v411 = vmul.f32 %v404, %v407
      %vm412 = vcmask 261120
      %v414 = vsel %vm412, %v277, 0
      %v417 = vsel %vm412, %v278, 0
      %v420 = vsel %vm412, %v279, 0
      %v423 = vsel %vm412, %v280, 0
      %v426 = vsel %vm412, %v281, 0
      %v429 = vsel %vm412, %v282, 0
      %v432 = vsel %vm412, %v283, 0
      %v435 = vsel %vm412, %v284, 0
      %437 = vmatprep.subr.mxu0 0.0
      %438 = vmatpush1.msra.mxu0 %v408
      %439 = vmatprep.subr.mxu0 0.0
      %440 = vmatpush1.msra.mxu0 %v409
      %441 = vmatprep.subr.mxu0 0.0
      %442 = vmatpush1.msra.mxu0 %v410
      %443 = vmatprep.subr.mxu0 0.0
      %444 = vmatpush1.msra.mxu0 %v411
      %445 = vmatprep.subr.mxu0 0.0
      %446 = vmatpush1.msra.mxu0 0.0
      %447 = vmatprep.subr.mxu0 0.0
      %448 = vmatpush1.msra.mxu0 0.0
      %449 = vmatprep.subr.mxu0 0.0
      %450 = vmatpush1.msra.mxu0 0.0
      %451 = vmatprep.subr.mxu0 0.0
      %452 = vmatpush1.msra.mxu0 0.0
      %453 = vmatprep.subr.mxu0 0.0
      %454 = vmatpush1.msra.mxu0 0.0
      %455 = vmatprep.subr.mxu0 0.0
      %456 = vmatpush1.msra.mxu0 0.0
      %457 = vmatprep.subr.mxu0 0.0
      %458 = vmatpush1.msra.mxu0 0.0
      %459 = vmatprep.subr.mxu0 0.0
      %460 = vmatpush1.msra.mxu0 0.0
      %461 = vmatprep.subr.mxu0 0.0
      %462 = vmatpush1.msra.mxu0 0.0
      %463 = vmatprep.subr.mxu0 0.0
      %464 = vmatpush1.msra.mxu0 0.0
      %465 = vmatprep.subr.mxu0 0.0
      %466 = vmatpush1.msra.mxu0 0.0
      %467 = vmatprep.subr.mxu0 0.0
      %468 = vmatpush1.msra.mxu0 0.0
      %469 = vmatprep.subr.mxu0 0.0
      %470 = vmatpush1.msra.mxu0 0.0
      %471 = vmatprep.subr.mxu0 0.0
      %472 = vmatpush1.msra.mxu0 0.0
      %473 = vmatprep.subr.mxu0 0.0
      %474 = vmatpush1.msra.mxu0 0.0
      %475 = vmatprep.subr.mxu0 0.0
      %476 = vmatpush1.msra.mxu0 0.0
      %477 = vmatprep.subr.mxu0 0.0
      %478 = vmatpush1.msra.mxu0 0.0
      %479 = vmatprep.subr.mxu0 0.0
      %480 = vmatpush1.msra.mxu0 0.0
      %481 = vmatprep.subr.mxu0 0.0
      %482 = vmatpush1.msra.mxu0 0.0
      %483 = vmatprep.subr.mxu0 0.0
      %484 = vmatpush1.msra.mxu0 0.0
      %485 = vmatprep.subr.mxu0 0.0
      %486 = vmatpush1.msra.mxu0 0.0
      %487 = vmatprep.subr.mxu0 0.0
      %488 = vmatpush1.msra.mxu0 0.0
      %489 = vmatprep.subr.mxu0 0.0
      %490 = vmatpush1.msra.mxu0 0.0
      %491 = vmatprep.subr.mxu0 0.0
      %492 = vmatpush1.msra.mxu0 0.0
      %493 = vmatprep.subr.mxu0 0.0
      %494 = vmatpush1.msra.mxu0 0.0
      %495 = vmatprep.subr.mxu0 0.0
      %496 = vmatpush1.msra.mxu0 0.0
      %497 = vmatprep.subr.mxu0 0.0
      %498 = vmatpush1.msra.mxu0 0.0
      %499 = vmatprep.subr.mxu0 0.0
      %500 = vmatpush1.msra.mxu0 0.0
      %501 = vmatprep.mubr.f32.mxu0 0.0
      %502 = vmatmul.mubr.f32.gmra.mrb[0].mxu0 %v414
      %v503 = vpop.f32.mrb[0].mxu0
      %v504 = vadd.f32 0.0, %v503
      %v505 = vpop.f32.mrb[0].mxu0
      %506 = vmatprep.mubr.f32.mxu0 0.0
      %507 = vmatmul.mubr.f32.gmra.mrb[0].mxu0 %v417
      %v508 = vpop.f32.mrb[0].mxu0
      %v509 = vadd.f32 0.0, %v508
      %v510 = vpop.f32.mrb[0].mxu0
      %511 = vmatprep.mubr.f32.mxu0 0.0
      %512 = vmatmul.mubr.f32.gmra.mrb[0].mxu0 %v420
      %v513 = vpop.f32.mrb[0].mxu0
      %v514 = vadd.f32 0.0, %v513
      %v515 = vpop.f32.mrb[0].mxu0
      %516 = vmatprep.mubr.f32.mxu0 0.0
      %517 = vmatmul.mubr.f32.gmra.mrb[0].mxu0 %v423
      %v518 = vpop.f32.mrb[0].mxu0
      %v519 = vadd.f32 0.0, %v518
      %v520 = vpop.f32.mrb[0].mxu0
      %521 = vmatprep.mubr.f32.mxu0 0.0
      %522 = vmatmul.mubr.f32.gmra.mrb[0].mxu0 %v426
      %v523 = vpop.f32.mrb[0].mxu0
      %v524 = vadd.f32 0.0, %v523
      %v525 = vpop.f32.mrb[0].mxu0
      %526 = vmatprep.mubr.f32.mxu0 0.0
      %527 = vmatmul.mubr.f32.gmra.mrb[0].mxu0 %v429
      %v528 = vpop.f32.mrb[0].mxu0
      %v529 = vadd.f32 0.0, %v528
      %v530 = vpop.f32.mrb[0].mxu0
      %531 = vmatprep.mubr.f32.mxu0 0.0
      %532 = vmatmul.mubr.f32.gmra.mrb[0].mxu0 %v432
      %v533 = vpop.f32.mrb[0].mxu0
      %v534 = vadd.f32 0.0, %v533
      %v535 = vpop.f32.mrb[0].mxu0
      %536 = vmatprep.mubr.f32.mxu0 0.0
      %537 = vmatmul.mubr.f32.gmra.mrb[0].mxu0 %v435
      %v538 = vpop.f32.mrb[0].mxu0
      %v539 = vadd.f32 0.0, %v538
      %v540 = vpop.f32.mrb[0].mxu0
      %541 = vdwg.mxu0
      %543 = vset.pattern.permute.xlu0 0
      %544 = vperm.xlu0 %543, %v504
      %v545 = vpop.permute.xlu0 %544
      %548 = vset.pattern.permute.xlu0 0
      %549 = vperm.xlu0 %548, %v509
      %v550 = vpop.permute.xlu0 %549
      %553 = vset.pattern.permute.xlu0 0
      %554 = vperm.xlu0 %553, %v514
      %v555 = vpop.permute.xlu0 %554
      %558 = vset.pattern.permute.xlu0 0
      %559 = vperm.xlu0 %558, %v519
      %v560 = vpop.permute.xlu0 %559
      %563 = vset.pattern.permute.xlu0 0
      %564 = vperm.xlu0 %563, %v524
      %v565 = vpop.permute.xlu0 %564
      %568 = vset.pattern.permute.xlu0 0
      %569 = vperm.xlu0 %568, %v529
      %v570 = vpop.permute.xlu0 %569
      %573 = vset.pattern.permute.xlu0 0
      %574 = vperm.xlu0 %573, %v534
      %v575 = vpop.permute.xlu0 %574
      %578 = vset.pattern.permute.xlu0 0
      %579 = vperm.xlu0 %578, %v539
      %v580 = vpop.permute.xlu0 %579
      %v582 = vsub.f32 %v265, %v545
      %v583 = vsub.f32 %v266, %v550
      %v584 = vsub.f32 %v267, %v555
      %v585 = vsub.f32 %v268, %v560
      %v586 = vsub.f32 %v269, %v565
      %v587 = vsub.f32 %v270, %v570
      %v588 = vsub.f32 %v271, %v575
      %v589 = vsub.f32 %v272, %v580
      %v590 = vmul.f32 %v582, %v582
      %v591 = vmul.f32 %v583, %v583
      %v592 = vmul.f32 %v584, %v584
      %v593 = vmul.f32 %v585, %v585
      %v594 = vmul.f32 %v586, %v586
      %v595 = vmul.f32 %v587, %v587
      %v596 = vmul.f32 %v588, %v588
      %v597 = vmul.f32 %v589, %v589
      %v598 = vsel %vm285, %v590, 0.0
      %599 = vadd.xlane.f32.xlu0 %v598
      %v600 = vpop.xlane.xlu0 %599
      %v601 = vsel %vm285, %v591, 0.0
      %602 = vadd.xlane.f32.xlu0 %v601
      %v603 = vpop.xlane.xlu0 %602
      %v604 = vsel %vm285, %v592, 0.0
      %605 = vadd.xlane.f32.xlu0 %v604
      %v606 = vpop.xlane.xlu0 %605
      %v607 = vsel %vm285, %v593, 0.0
      %608 = vadd.xlane.f32.xlu0 %v607
      %v609 = vpop.xlane.xlu0 %608
      %v610 = vsel %vm285, %v594, 0.0
      %611 = vadd.xlane.f32.xlu0 %v610
      %v612 = vpop.xlane.xlu0 %611
      %v613 = vsel %vm285, %v595, 0.0
      %614 = vadd.xlane.f32.xlu0 %v613
      %v615 = vpop.xlane.xlu0 %614
      %v616 = vsel %vm285, %v596, 0.0
      %617 = vadd.xlane.f32.xlu0 %v616
      %v618 = vpop.xlane.xlu0 %617
      %v619 = vsel %vm285, %v597, 0.0
      %620 = vadd.xlane.f32.xlu0 %v619
      %v621 = vpop.xlane.xlu0 %620
      %622 = vmatprep.subr.mxu0 0.0
      %623 = vmatpush1.msra.mxu0 %v600
      %624 = vmatprep.subr.mxu0 0.0
      %625 = vmatpush1.msra.mxu0 %v603
      %626 = vmatprep.subr.mxu0 0.0
      %627 = vmatpush1.msra.mxu0 %v606
      %628 = vmatprep.subr.mxu0 0.0
      %629 = vmatpush1.msra.mxu0 %v609
      %630 = vmatprep.subr.mxu0 0.0
      %631 = vmatpush1.msra.mxu0 %v612
      %632 = vmatprep.subr.mxu0 0.0
      %633 = vmatpush1.msra.mxu0 %v615
      %634 = vmatprep.subr.mxu0 0.0
      %635 = vmatpush1.msra.mxu0 %v618
      %636 = vmatprep.subr.mxu0 0.0
      %637 = vmatpush1.msra.mxu0 %v621
      %638 = vmatprep.subr.mxu0 0.0
      %639 = vmatpush1.msra.mxu0 0.0
      %640 = vmatprep.subr.mxu0 0.0
      %641 = vmatpush1.msra.mxu0 0.0
      %642 = vmatprep.subr.mxu0 0.0
      %643 = vmatpush1.msra.mxu0 0.0
      %644 = vmatprep.subr.mxu0 0.0
      %645 = vmatpush1.msra.mxu0 0.0
      %646 = vmatprep.subr.mxu0 0.0
      %647 = vmatpush1.msra.mxu0 0.0
      %648 = vmatprep.subr.mxu0 0.0
      %649 = vmatpush1.msra.mxu0 0.0
      %650 = vmatprep.subr.mxu0 0.0
      %651 = vmatpush1.msra.mxu0 0.0
      %652 = vmatprep.subr.mxu0 0.0
      %653 = vmatpush1.msra.mxu0 0.0
      %654 = vmatprep.subr.mxu0 0.0
      %655 = vmatpush1.msra.mxu0 0.0
      %656 = vmatprep.subr.mxu0 0.0
      %657 = vmatpush1.msra.mxu0 0.0
      %658 = vmatprep.subr.mxu0 0.0
      %659 = vmatpush1.msra.mxu0 0.0
      %660 = vmatprep.subr.mxu0 0.0
      %661 = vmatpush1.msra.mxu0 0.0
      %662 = vmatprep.subr.mxu0 0.0
      %663 = vmatpush1.msra.mxu0 0.0
      %664 = vmatprep.subr.mxu0 0.0
      %665 = vmatpush1.msra.mxu0 0.0
      %666 = vmatprep.subr.mxu0 0.0
      %667 = vmatpush1.msra.mxu0 0.0
      %668 = vmatprep.subr.mxu0 0.0
      %669 = vmatpush1.msra.mxu0 0.0
      %670 = vmatprep.subr.mxu0 0.0
      %671 = vmatpush1.msra.mxu0 0.0
      %672 = vmatprep.subr.mxu0 0.0
      %673 = vmatpush1.msra.mxu0 0.0
      %674 = vmatprep.subr.mxu0 0.0
      %675 = vmatpush1.msra.mxu0 0.0
      %676 = vmatprep.subr.mxu0 0.0
      %677 = vmatpush1.msra.mxu0 0.0
      %678 = vmatprep.subr.mxu0 0.0
      %679 = vmatpush1.msra.mxu0 0.0
      %680 = vmatprep.subr.mxu0 0.0
      %681 = vmatpush1.msra.mxu0 0.0
      %682 = vmatprep.subr.mxu0 0.0
      %683 = vmatpush1.msra.mxu0 0.0
      %684 = vmatprep.subr.mxu0 0.0
      %685 = vmatpush1.msra.mxu0 0.0
      %686 = vmatprep.mubr.f32.mxu0 0.0
      %687 = vmatmul.mubr.f32.gmra.mrb[0].mxu0 %v311
      %v688 = vpop.f32.mrb[0].mxu0
      %v689 = vadd.f32 0.0, %v688
      %v690 = vpop.f32.mrb[0].mxu0
      %691 = vmatprep.mubr.f32.mxu0 0.0
      %692 = vmatmul.mubr.f32.gmra.mrb[0].mxu0 %v314
      %v693 = vpop.f32.mrb[0].mxu0
      %v694 = vadd.f32 0.0, %v693
      %v695 = vpop.f32.mrb[0].mxu0
      %696 = vmatprep.mubr.f32.mxu0 0.0
      %697 = vmatmul.mubr.f32.gmra.mrb[0].mxu0 %v317
      %v698 = vpop.f32.mrb[0].mxu0
      %v699 = vadd.f32 0.0, %v698
      %v700 = vpop.f32.mrb[0].mxu0
      %701 = vmatprep.mubr.f32.mxu0 0.0
      %702 = vmatmul.mubr.f32.gmra.mrb[0].mxu0 %v320
      %v703 = vpop.f32.mrb[0].mxu0
      %v704 = vadd.f32 0.0, %v703
      %v705 = vpop.f32.mrb[0].mxu0
      %706 = vdwg.mxu0
      %v707 = vmul.f32 %v689, %v407
      %v708 = vmul.f32 %v694, %v407
      %v709 = vmul.f32 %v699, %v407
      %v710 = vmul.f32 %v704, %v407
      %v711 = vadd.f32 %v707, 1e-05
      %v712 = vadd.f32 %v708, 1e-05
      %v713 = vadd.f32 %v709, 1e-05
      %v714 = vadd.f32 %v710, 1e-05
      %v715 = vrsqrt.pop %v711
      %v716 = vrsqrt.pop %v712
      %v717 = vrsqrt.pop %v713
      %v718 = vrsqrt.pop %v714
      %719 = vmatprep.subr.mxu0 0.0
      %720 = vmatpush1.msra.mxu0 %v715
      %721 = vmatprep.subr.mxu0 0.0
      %722 = vmatpush1.msra.mxu0 %v716
      %723 = vmatprep.subr.mxu0 0.0
      %724 = vmatpush1.msra.mxu0 %v717
      %725 = vmatprep.subr.mxu0 0.0
      %726 = vmatpush1.msra.mxu0 %v718
      %727 = vmatprep.subr.mxu0 0.0
      %728 = vmatpush1.msra.mxu0 0.0
      %729 = vmatprep.subr.mxu0 0.0
      %730 = vmatpush1.msra.mxu0 0.0
      %731 = vmatprep.subr.mxu0 0.0
      %732 = vmatpush1.msra.mxu0 0.0
      %733 = vmatprep.subr.mxu0 0.0
      %734 = vmatpush1.msra.mxu0 0.0
      %735 = vmatprep.subr.mxu0 0.0
      %736 = vmatpush1.msra.mxu0 0.0
      %737 = vmatprep.subr.mxu0 0.0
      %738 = vmatpush1.msra.mxu0 0.0
      %739 = vmatprep.subr.mxu0 0.0
      %740 = vmatpush1.msra.mxu0 0.0
      %741 = vmatprep.subr.mxu0 0.0
      %742 = vmatpush1.msra.mxu0 0.0
      %743 = vmatprep.subr.mxu0 0.0
      %744 = vmatpush1.msra.mxu0 0.0
      %745 = vmatprep.subr.mxu0 0.0
      %746 = vmatpush1.msra.mxu0 0.0
      %747 = vmatprep.subr.mxu0 0.0
      %748 = vmatpush1.msra.mxu0 0.0
      %749 = vmatprep.subr.mxu0 0.0
      %750 = vmatpush1.msra.mxu0 0.0
      %751 = vmatprep.subr.mxu0 0.0
      %752 = vmatpush1.msra.mxu0 0.0
      %753 = vmatprep.subr.mxu0 0.0
      %754 = vmatpush1.msra.mxu0 0.0
      %755 = vmatprep.subr.mxu0 0.0
      %756 = vmatpush1.msra.mxu0 0.0
      %757 = vmatprep.subr.mxu0 0.0
      %758 = vmatpush1.msra.mxu0 0.0
      %759 = vmatprep.subr.mxu0 0.0
      %760 = vmatpush1.msra.mxu0 0.0
      %761 = vmatprep.subr.mxu0 0.0
      %762 = vmatpush1.msra.mxu0 0.0
      %763 = vmatprep.subr.mxu0 0.0
      %764 = vmatpush1.msra.mxu0 0.0
      %765 = vmatprep.subr.mxu0 0.0
      %766 = vmatpush1.msra.mxu0 0.0
      %767 = vmatprep.subr.mxu0 0.0
      %768 = vmatpush1.msra.mxu0 0.0
      %769 = vmatprep.subr.mxu0 0.0
      %770 = vmatpush1.msra.mxu0 0.0
      %771 = vmatprep.subr.mxu0 0.0
      %772 = vmatpush1.msra.mxu0 0.0
      %773 = vmatprep.subr.mxu0 0.0
      %774 = vmatpush1.msra.mxu0 0.0
      %775 = vmatprep.subr.mxu0 0.0
      %776 = vmatpush1.msra.mxu0 0.0
      %777 = vmatprep.subr.mxu0 0.0
      %778 = vmatpush1.msra.mxu0 0.0
      %779 = vmatprep.subr.mxu0 0.0
      %780 = vmatpush1.msra.mxu0 0.0
      %781 = vmatprep.subr.mxu0 0.0
      %782 = vmatpush1.msra.mxu0 0.0
      %783 = vmatprep.mubr.f32.mxu0 0.0
      %784 = vmatmul.mubr.f32.gmra.mrb[0].mxu0 %v414
      %v785 = vpop.f32.mrb[0].mxu0
      %v786 = vadd.f32 0.0, %v785
      %v787 = vpop.f32.mrb[0].mxu0
      %788 = vmatprep.mubr.f32.mxu0 0.0
      %789 = vmatmul.mubr.f32.gmra.mrb[0].mxu0 %v417
      %v790 = vpop.f32.mrb[0].mxu0
      %v791 = vadd.f32 0.0, %v790
      %v792 = vpop.f32.mrb[0].mxu0
      %793 = vmatprep.mubr.f32.mxu0 0.0
      %794 = vmatmul.mubr.f32.gmra.mrb[0].mxu0 %v420
      %v795 = vpop.f32.mrb[0].mxu0
      %v796 = vadd.f32 0.0, %v795
      %v797 = vpop.f32.mrb[0].mxu0
      %798 = vmatprep.mubr.f32.mxu0 0.0
      %799 = vmatmul.mubr.f32.gmra.mrb[0].mxu0 %v423
      %v800 = vpop.f32.mrb[0].mxu0
      %v801 = vadd.f32 0.0, %v800
      %v802 = vpop.f32.mrb[0].mxu0
      %803 = vmatprep.mubr.f32.mxu0 0.0
      %804 = vmatmul.mubr.f32.gmra.mrb[0].mxu0 %v426
      %v805 = vpop.f32.mrb[0].mxu0
      %v806 = vadd.f32 0.0, %v805
      %v807 = vpop.f32.mrb[0].mxu0
      %808 = vmatprep.mubr.f32.mxu0 0.0
      %809 = vmatmul.mubr.f32.gmra.mrb[0].mxu0 %v429
      %v810 = vpop.f32.mrb[0].mxu0
      %v811 = vadd.f32 0.0, %v810
      %v812 = vpop.f32.mrb[0].mxu0
      %813 = vmatprep.mubr.f32.mxu0 0.0
      %814 = vmatmul.mubr.f32.gmra.mrb[0].mxu0 %v432
      %v815 = vpop.f32.mrb[0].mxu0
      %v816 = vadd.f32 0.0, %v815
      %v817 = vpop.f32.mrb[0].mxu0
      %818 = vmatprep.mubr.f32.mxu0 0.0
      %819 = vmatmul.mubr.f32.gmra.mrb[0].mxu0 %v435
      %v820 = vpop.f32.mrb[0].mxu0
      %v821 = vadd.f32 0.0, %v820
      %v822 = vpop.f32.mrb[0].mxu0
      %823 = vdwg.mxu0
      %v824 = vld [vmem:[%s1] sm:$0xff]
      %v825 = vld [vmem:[%s1 + $0x8] sm:$0xff]
      %v826 = vld [vmem:[%s1 + $0x10] sm:$0xff]
      %v827 = vld [vmem:[%s1 + $0x18] sm:$0xff]
      %v828 = vld [vmem:[%s1 + $0x20] sm:$0xff]
      %v829 = vld [vmem:[%s1 + $0x28] sm:$0xff]
      %v830 = vld [vmem:[%s1 + $0x30] sm:$0xff]
      %v831 = vld [vmem:[%s1 + $0x38] sm:$0xff]
      %v832 = vmul.f32 %v786, %v824
      %v833 = vmul.f32 %v791, %v825
      %v834 = vmul.f32 %v796, %v826
      %v835 = vmul.f32 %v801, %v827
      %v836 = vmul.f32 %v806, %v828
      %v837 = vmul.f32 %v811, %v829
      %v838 = vmul.f32 %v816, %v830
      %v839 = vmul.f32 %v821, %v831
      %vm840 = vcmask 7168
      %841 = vst.msk [vmem:[%s259] sm:$0xff] %vm840, %v832
      %842 = vst.msk [vmem:[%s259 + $0x8] sm:$0xff] %vm840, %v833
      %843 = vst.msk [vmem:[%s259 + $0x10] sm:$0xff] %vm840, %v834
      %844 = vst.msk [vmem:[%s259 + $0x18] sm:$0xff] %vm840, %v835
      %845 = vst.msk [vmem:[%s259 + $0x20] sm:$0xff] %vm840, %v836
      %846 = vst.msk [vmem:[%s259 + $0x28] sm:$0xff] %vm840, %v837
      %847 = vst.msk [vmem:[%s259 + $0x30] sm:$0xff] %vm840, %v838
      %848 = vst.msk [vmem:[%s259 + $0x38] sm:$0xff] %vm840, %v839
      %v849 = vld [vmem:[%s2] sm:$0xff]
      %v850 = vld [vmem:[%s2 + $0x8] sm:$0xff]
      %v851 = vld [vmem:[%s2 + $0x10] sm:$0xff]
      %v852 = vld [vmem:[%s2 + $0x18] sm:$0xff]
      %v853 = vld [vmem:[%s2 + $0x20] sm:$0xff]
      %v854 = vld [vmem:[%s2 + $0x28] sm:$0xff]
      %v855 = vld [vmem:[%s2 + $0x30] sm:$0xff]
      %v856 = vld [vmem:[%s2 + $0x38] sm:$0xff]
      %v857 = vmul.f32 %v504, %v832
      %v858 = vmul.f32 %v509, %v833
      %v859 = vmul.f32 %v514, %v834
      %v860 = vmul.f32 %v519, %v835
      %v861 = vmul.f32 %v524, %v836
      %v862 = vmul.f32 %v529, %v837
      %v863 = vmul.f32 %v534, %v838
      %v864 = vmul.f32 %v539, %v839
      %v865 = vsub.f32 %v849, %v857
      %v866 = vsub.f32 %v850, %v858
      %v867 = vsub.f32 %v851, %v859
      %v868 = vsub.f32 %v852, %v860
      %v869 = vsub.f32 %v853, %v861
      %v870 = vsub.f32 %v854, %v862
      %v871 = vsub.f32 %v855, %v863
      %v872 = vsub.f32 %v856, %v864
      %873 = vst.msk [vmem:[%s264] sm:$0xff] %vm840, %v865
      %874 = vst.msk [vmem:[%s264 + $0x8] sm:$0xff] %vm840, %v866
      %875 = vst.msk [vmem:[%s264 + $0x10] sm:$0xff] %vm840, %v867
      %876 = vst.msk [vmem:[%s264 + $0x18] sm:$0xff] %vm840, %v868
      %877 = vst.msk [vmem:[%s264 + $0x20] sm:$0xff] %vm840, %v869
      %878 = vst.msk [vmem:[%s264 + $0x28] sm:$0xff] %vm840, %v870
      %879 = vst.msk [vmem:[%s264 + $0x30] sm:$0xff] %vm840, %v871
      %880 = vst.msk [vmem:[%s264 + $0x38] sm:$0xff] %vm840, %v872
      %p881 = scmp.lt.s32.totalorder %s18, 1
      %s882 = scalar_select %p881, %s18, 1
      %s883 = smul.addr %s882, 8
      %s884 = smul.addr %s883, 8
      %s885 = scalar_lea.vmem %s5, %s884
      %p886 = scmp.lt.s32.totalorder %s18, 1
      %s887 = scalar_select %p886, %s18, 1
      %s888 = smul.addr %s887, 8
      %s889 = smul.addr %s888, 8
      %s890 = scalar_lea.vmem %s6, %s889
      // Predicated region
      $region41: #{tpu_custom_call.1} parent=39 // pred_check
        %p891 = pneg %p146
      $region42: #{tpu_custom_call.1} parent=39 // pred_check_branch
        %893 = sbr.rel (%p891) target = $region44
      $region43: #{tpu_custom_call.1} parent=39 // pred_region
        _
      $region44: #{tpu_custom_call.1} parent=39 // pred_fallthru
        _
      // Predicated region
      $region45: #{tpu_custom_call.1} parent=39 // pred_check
        %p894 = pneg %p172
      $region46: #{tpu_custom_call.1} parent=39 // pred_check_branch
        %896 = sbr.rel (%p894) target = $region48
      $region47: #{tpu_custom_call.1} parent=39 // pred_region
        _
      $region48: #{tpu_custom_call.1} parent=39 // pred_fallthru
        _
    $region40: #{tpu_custom_call.1} parent=5 // pred_fallthru
      _
    %p897 = scmp.le.s32.totalorder 2, %s13
    // Predicated region
    $region49: #{tpu_custom_call.1} parent=5 // pred_check
      %p898 = pneg %p897
    $region50: #{tpu_custom_call.1} parent=5 // pred_check_branch
      %900 = sbr.rel (%p898) target = $region52
    $region51: #{tpu_custom_call.1} parent=5 // pred_region
      %s901 = ssub.s32 %s13, 2
      // Predicated region
      $region53: #{tpu_custom_call.1} parent=51 // pred_check
        %p902 = pneg %p152
      $region54: #{tpu_custom_call.1} parent=51 // pred_check_branch
        %904 = sbr.rel (%p902) target = $region56
      $region55: #{tpu_custom_call.1} parent=51 // pred_region
        %p905 = scmp.lt.s32.totalorder %s19, 1
        %s906 = scalar_select %p905, %s19, 1
        %s907 = smul.addr %s906, 8
        %s908 = smul.addr %s907, 8
        %s909 = scalar_lea.vmem %s5, %s908
      $region56: #{tpu_custom_call.1} parent=51 // pred_fallthru
        _
      // Predicated region
      $region57: #{tpu_custom_call.1} parent=51 // pred_check
        %p910 = pneg %p178
      $region58: #{tpu_custom_call.1} parent=51 // pred_check_branch
        %912 = sbr.rel (%p910) target = $region60
      $region59: #{tpu_custom_call.1} parent=51 // pred_region
        %p913 = scmp.lt.s32.totalorder %s19, 1
        %s914 = scalar_select %p913, %s19, 1
        %s915 = smul.addr %s914, 8
        %s916 = smul.addr %s915, 8
        %s917 = scalar_lea.vmem %s6, %s916
      $region60: #{tpu_custom_call.1} parent=51 // pred_fallthru
        _
    $region52: #{tpu_custom_call.1} parent=5 // pred_fallthru
      _
  $region6: #{tpu_custom_call.1} parent=0 // loop_footer
    %s17 = sadd.s32 1, %s13
  $region7: #{tpu_custom_call.1} parent=0 // loop_footer_branch
    %12 = sbr.rel target = $region3
  $region8: #{tpu_custom_call.1} parent=0 // loop_exit
    _

</llo_original>
